<compile_context>
chip_gen: v5e
topology: v5e:2x2
jax: 0.10.0
libtpu: 0.0.40
codegen_flags: <defaults>
</compile_context>

<pallas_src>
import random
from functools import lru_cache

import jax
import jax.numpy as jnp
from jax.experimental import pallas as pl
from jax.experimental.pallas import tpu as pltpu

_LANE = 128
_SUBLANE = 8


def _round_up(x, m):
    return ((x + m - 1) // m) * m


def _cdiv(a, b):
    return -(-a // b)


# ----------------------------------------------------------------------------
# interpolation matrices (wrapper glue; scale_factor may be traced under jit)
# ----------------------------------------------------------------------------
def _bilinear_matrix(in_size, out_size, scale_factor):
    """(out_size, in_size) matrix matching F.interpolate(bilinear,
    align_corners=False) with an explicit scale_factor:
    src = (dst + 0.5)/scale_factor - 0.5, clamped at the borders.
    Built with dense one-hot compares (no XLA scatter -> no serialization)."""
    scale = jnp.asarray(scale_factor, dtype=jnp.float32)
    dst = jnp.arange(out_size, dtype=jnp.float32)
    src = jnp.maximum((dst + 0.5) / scale - 0.5, 0.0)
    lo = jnp.clip(jnp.floor(src).astype(jnp.int32), 0, in_size - 1)
    hi = jnp.minimum(lo + 1, in_size - 1)
    frac = jnp.clip(src - lo.astype(jnp.float32), 0.0, 1.0)
    cols = jnp.arange(in_size, dtype=jnp.int32)[None, :]          # (1, in)
    w_lo = jnp.where(cols == lo[:, None], (1.0 - frac)[:, None], 0.0)
    w_hi = jnp.where(cols == hi[:, None], frac[:, None], 0.0)
    return (w_lo + w_hi).astype(jnp.float32)


# ----------------------------------------------------------------------------
# kernel bodies
# ----------------------------------------------------------------------------
def _for_each_plane(n_planes, body):
    # Unroll small loops fully (scheduler visibility); partially unroll big ones.
    if n_planes <= 8:
        for b in range(n_planes):
            body(b)
    else:
        def loop_body(b, carry):
            body(b)
            return carry
        jax.lax.fori_loop(0, n_planes, loop_body, 0, unroll=8)


def _aligned_start(b, stride):
    # stride is always a multiple of 8 where this is used.
    if isinstance(b, int):
        return b * stride
    return pl.multiple_of(b * stride, _SUBLANE)


def _make_width_first_kernel(B, H_p, compute_dtype):
    """x_ref: (B*H_p, W) planes stacked along rows; collapsed width pass on the
    MXU, then per-plane height pass.  H_p is a multiple of the packed sublane."""
    cdt = jnp.dtype(compute_dtype)

    def kernel(wh_ref, wwt_ref, x_ref, o_ref, tmp_ref):
        xv = x_ref[...]
        if xv.dtype != cdt:
            xv = xv.astype(cdt)
        # width pass for all B planes in one matmul: (B*H_p, W) @ (W, W_pad)
        tmp_ref[...] = jnp.dot(xv, wwt_ref[...],
                               preferred_element_type=jnp.float32).astype(tmp_ref.dtype)
        wh = wh_ref[...]

        def plane(b):
            rows = pl.ds(_aligned_start(b, H_p), H_p)
            o_ref[b] = jnp.dot(wh, tmp_ref[rows, :],
                               preferred_element_type=jnp.float32).astype(o_ref.dtype)

        _for_each_plane(B, plane)

    return kernel


def _make_height_first_kernel(B, H_out_p, compute_dtype):
    """x_ref: (B, H, W); per-plane height pass into scratch, then collapsed
    width pass writing the lane-dense 2-D output.  H_out_p is a multiple of the
    packed sublane."""
    cdt = jnp.dtype(compute_dtype)

    def kernel(wh_ref, wwt_ref, x_ref, o_ref, tmp_ref):
        wh = wh_ref[...]

        def plane(b):
            xb = x_ref[b]
            if xb.dtype != cdt:
                xb = xb.astype(cdt)
            rows = pl.ds(_aligned_start(b, H_out_p), H_out_p)
            tmp_ref[rows, :] = jnp.dot(wh, xb,
                                       preferred_element_type=jnp.float32).astype(tmp_ref.dtype)

        _for_each_plane(B, plane)
        o_ref[...] = jnp.dot(tmp_ref[...], wwt_ref[...],
                             preferred_element_type=jnp.float32).astype(o_ref.dtype)

    return kernel


# ----------------------------------------------------------------------------
# cached builder: one compiled function per static shape key
# ----------------------------------------------------------------------------
@lru_cache(maxsize=None)
def _build_resize_fn(N, C, H, W, H_out, W_out, dtype_name):
    dtype = jnp.dtype(dtype_name)
    NC = N * C

    # native MXU dtype: bf16 stays bf16 (f32 accumulate); everything else f32.
    compute_dtype = jnp.bfloat16 if dtype == jnp.dtype(jnp.bfloat16) else jnp.float32
    comp_isz = jnp.dtype(compute_dtype).itemsize
    in_isz = dtype.itemsize
    out_isz = dtype.itemsize

    # sublane padding (pack-aware: 8 rows for f32 scratch, 16 for bf16) so the
    # collapsed kernels are always legal and row-slices stay tile-aligned.
    sub = _SUBLANE * max(1, 4 // comp_isz)
    H_p = _round_up(H, sub)
    H_out_p = _round_up(H_out, sub)
    W_pad = _round_up(W_out, _LANE)           # lane-dense output stores
    # TODO(synk): optionally lane-pad W of the input/scratch to 128 for large W
    # (lane-dense intermediate stores); skipped to avoid DMA blowup at small W.

    # ---- pass ordering: MXU MAC count per plane, incl. W_pad zero-col waste
    flops_wf = H_p * W * W_pad + H_out * H_p * W_pad
    flops_hf = H_out_p * H * W + H_out_p * W * W_pad
    config = "hf" if flops_hf <= flops_wf else "wf"

    # ---- VMEM budget -> planes per grid step (generation-aware) ----
    try:
        vmem_cap = int(pltpu.get_tpu_info().vmem_capacity_bytes)
    except Exception:
        vmem_cap = 64 * 1024 * 1024           # v7x-safe fallback
    budget = int(vmem_cap * 0.4)
    if config == "wf":
        per_plane = (2 * in_isz * H_p * W              # input block, double-buffered
                     + comp_isz * H_p * W_pad          # scratch
                     + 4 * H_p * W_pad                 # f32 matmul result before cast
                     + 2 * out_isz * H_out * W_pad)    # output block, double-buffered
        fixed = (2 * comp_isz * (H_out * H_p + W * W_pad)   # weights, double-buffered
                 + 4 * H_out * W_pad)                       # per-plane 2nd matmul f32 temp
    else:
        per_plane = (2 * in_isz * H * W
                     + comp_isz * H_out_p * W
                     + 4 * H_out_p * W_pad
                     + 2 * out_isz * H_out_p * W_pad)
        fixed = (2 * comp_isz * (H_out_p * H + W * W_pad)
                 + 4 * H_out_p * W)
    B_cap = max(1, (budget - fixed) // per_plane) if budget > fixed else 1
    # Keep >= min(NC, 4) grid steps so the BlockSpec pipeline overlaps DMA with
    # compute (per-step overhead ~0.35us) and v7x can split the parallel axis
    # across both TensorCores.
    min_steps = min(NC, 4)
    B = int(max(1, min(B_cap, _cdiv(NC, min_steps))))
    steps = _cdiv(NC, B)
    NC_pad = steps * B
    grid = (steps,)
    vmem_limit = int(vmem_cap * 0.85)

    # ---- per-config kernel & specs ----
    if config == "wf":
        kernel = _make_width_first_kernel(B, H_p, compute_dtype)
        wh_shape = (H_out, H_p)
        x_spec = pl.BlockSpec((B * H_p, W), lambda i: (i, 0))
        out_array_shape = (NC_pad, H_out, W_pad)
        out_spec = pl.BlockSpec((B, H_out, W_pad), lambda i: (i, 0, 0))
        scratch = [pltpu.VMEM((B * H_p, W_pad), compute_dtype)]
    else:
        kernel = _make_height_first_kernel(B, H_out_p, compute_dtype)
        wh_shape = (H_out_p, H)
        x_spec = pl.BlockSpec((B, H, W), lambda i: (i, 0, 0))
        out_array_shape = (NC_pad * H_out_p, W_pad)
        out_spec = pl.BlockSpec((B * H_out_p, W_pad), lambda i: (i, 0))
        scratch = [pltpu.VMEM((B * H_out_p, W), compute_dtype)]

    call = pl.pallas_call(
        kernel,
        out_shape=jax.ShapeDtypeStruct(out_array_shape, dtype),
        grid_spec=pltpu.PrefetchScalarGridSpec(
            num_scalar_prefetch=0,
            grid=grid,
            in_specs=[
                # constant weight blocks (index_map never changes -> fetched once)
                pl.BlockSpec(wh_shape, lambda i: (0, 0)),      # Wh (padded)
                pl.BlockSpec((W, W_pad), lambda i: (0, 0)),    # Ww^T, zero-padded
                x_spec,
            ],
            out_specs=out_spec,
            scratch_shapes=scratch,
        ),
        compiler_params=pltpu.CompilerParams(
            dimension_semantics=("parallel",),   # independent planes -> 2nd TC on v7x
            vmem_limit_bytes=vmem_limit,
        ),
    )

    def run(x, height_factor, width_factor):
        wh = _bilinear_matrix(H, H_out, height_factor)             # (H_out, H)
        ww = _bilinear_matrix(W, W_out, width_factor)              # (W_out, W)
        wwt = jnp.zeros((W, W_pad), jnp.float32).at[:, :W_out].set(ww.T)
        if config == "wf":
            wh_full = jnp.zeros((H_out, H_p), jnp.float32).at[:, :H].set(wh)
        else:
            wh_full = jnp.zeros((H_out_p, H), jnp.float32).at[:H_out, :].set(wh)
        wh_c = wh_full.astype(compute_dtype)
        wwt_c = wwt.astype(compute_dtype)

        xf = x.reshape(NC, H, W)
        if NC_pad != NC:
            xf = jnp.pad(xf, ((0, NC_pad - NC), (0, 0), (0, 0)))
        if config == "wf":
            if H_p != H:
                xf = jnp.pad(xf, ((0, 0), (0, H_p - H), (0, 0)))
            xf = xf.reshape(NC_pad * H_p, W)
        out = call(wh_c, wwt_c, xf)
        if config == "hf":
            out = out.reshape(NC_pad, H_out_p, W_pad)
        return out[:NC, :H_out, :W_out].reshape(N, C, H_out, W_out)

    return jax.jit(run)


def resize_4d_by_factor(x, height_factor, width_factor):
    """Bilinear resize of an NCHW tensor, matching
    F.interpolate(mode='bilinear', align_corners=False, scale_factor=...)."""
    N, C, H, W = x.shape
    H_out = max(int(H * height_factor), 1)   # floor, like PyTorch; guard size-0
    W_out = max(int(W * width_factor), 1)
    run = _build_resize_fn(N, C, H, W, H_out, W_out, jnp.dtype(x.dtype).name)
    return run(x, float(height_factor), float(width_factor))


class RandomResize:
    """JAX/Pallas port of torch_dreams random_resize (no learnable params).

    Scale factors are quantized to multiples of `quantize_step` so the set of
    output shapes — and hence Mosaic compilations — stays small and cached."""

    def __init__(self, max_size_factor, min_size_factor, seed=0,
                 quantize_step=1.0 / 32.0):
        self.max_size_factor = max_size_factor
        self.min_size_factor = min_size_factor
        self.quantize_step = quantize_step
        # Deterministic stand-in for Python's global random.uniform used in the
        # original forward(); factors must be host scalars since the output
        # shape depends on them.
        self._rng = random.Random(seed)

    def _draw_factor(self):
        f = self._rng.uniform(self.min_size_factor, self.max_size_factor)
        if self.quantize_step:
            # TODO(synk): quantization slightly perturbs the continuous uniform
            # draw of the original module; it exists to bound recompilation.
            f = round(f / self.quantize_step) * self.quantize_step
            f = min(max(f, self.min_size_factor), self.max_size_factor)
        return f

    def __call__(self, x):
        return resize_4d_by_factor(x, self._draw_factor(), self._draw_factor())


random_resize = RandomResize  # name parity with the original module


if __name__ == "__main__":
    key = jax.random.PRNGKey(0)
    x = jax.random.normal(key, (2, 4, 16, 16), dtype=jnp.float32)  # NCHW

    module = RandomResize(max_size_factor=1.2, min_size_factor=0.5, seed=0)
    y = jax.block_until_ready(module(x))
    assert y.ndim == 4 and y.shape[:2] == (2, 4)
    assert y.dtype == x.dtype
    assert bool(jnp.all(jnp.isfinite(y)))

    # repeated call reuses cached compilations (bounded by factor quantization)
    y_again = jax.block_until_ready(module(x))
    assert y_again.ndim == 4

    def _ref(xx, hf, wf):
        Hh, Ww = xx.shape[2], xx.shape[3]
        ho, wo = max(int(Hh * hf), 1), max(int(Ww * wf), 1)
        wh = _bilinear_matrix(Hh, ho, hf)
        ww = _bilinear_matrix(Ww, wo, wf)
        return jnp.einsum("oh,nchw,pw->ncop", wh, xx.astype(jnp.float32), ww,
                          precision=jax.lax.Precision.HIGHEST)

    x_odd = jax.random.normal(jax.random.PRNGKey(1), (1, 3, 12, 20), jnp.float32)
    x_wide = jax.random.normal(jax.random.PRNGKey(2), (1, 2, 16, 128), jnp.float32)
    cases = [
        (x, 0.75, 1.125, 2e-2),                       # height-first collapsed path
        (x, 0.5, 0.5625, 2e-2),                       # strong downscale
        (x_odd, 0.8, 1.1, 2e-2),                      # odd H / odd W_out (sublane pad)
        (x_wide, 2.0, 1.0, 2e-2),                     # width-first collapsed path
        (x.astype(jnp.bfloat16), 0.75, 1.125, 6e-2),  # native bf16 MXU path
    ]
    for xx, hf, wf, tol in cases:
        got = jax.block_until_ready(resize_4d_by_factor(xx, hf, wf))
        ref = _ref(xx, hf, wf)
        assert got.shape == ref.shape, (got.shape, ref.shape)
        err = float(jnp.max(jnp.abs(got.astype(jnp.float32) - ref)))
        assert bool(jnp.allclose(got.astype(jnp.float32), ref, atol=tol, rtol=tol)), \
            (xx.shape, xx.dtype, hf, wf, err)

    print("KERNEL_OK")
</pallas_src>

<mosaic_0001>
module attributes {stable_mosaic.version = 11 : i64} {
  func.func @kernel(%arg0: i32, %arg1: memref<24x16xf32, #tpu.memory_space<vmem>>, %arg2: memref<16x128xf32, #tpu.memory_space<vmem>>, %arg3: memref<2x16x16xf32, #tpu.memory_space<vmem>>, %arg4: memref<48x128xf32, #tpu.memory_space<vmem>>, %arg5: memref<48x16xf32, #tpu.memory_space<vmem>>) attributes {dimension_semantics = [#tpu.dimension_semantics<parallel>], iteration_bounds = array<i64: 4>, scalar_prefetch = 0 : i64, scratch_operands = 1 : i64, tpu.core_type = #tpu.core_type<tc>, window_params = [{pipeline_mode = #tpu.pipeline_mode<synchronous>, transform_indices = @transform_0, window_bounds = array<i64: 24, 16>}, {pipeline_mode = #tpu.pipeline_mode<synchronous>, transform_indices = @transform_1, window_bounds = array<i64: 16, 128>}, {transform_indices = @transform_2, window_bounds = array<i64: 2, 16, 16>}, {transform_indices = @transform_3, window_bounds = array<i64: 48, 128>}]} {
    %c0 = arith.constant 0 : index
    %c0_0 = arith.constant 0 : index
    %0 = vector.load %arg1[%c0, %c0_0] : memref<24x16xf32, #tpu.memory_space<vmem>>, vector<24x16xf32>
    %c0_1 = arith.constant 0 : index
    %c0_2 = arith.constant 0 : index
    %c0_3 = arith.constant 0 : index
    %1 = vector.load %arg3[%c0_1, %c0_2, %c0_3] : memref<2x16x16xf32, #tpu.memory_space<vmem>>, vector<1x16x16xf32>
    %2 = vector.shape_cast %1 : vector<1x16x16xf32> to vector<16x16xf32>
    %cst = arith.constant dense<0.000000e+00> : vector<24x16xf32>
    %3 = tpu.matmul %0, %2, %cst {dimension_numbers = #tpu.dot_dimension_numbers<[1], [0], [0], [1], [0, 0, 1, 1], [], []>} : vector<24x16xf32>, vector<16x16xf32>, vector<24x16xf32> -> vector<24x16xf32>
    %c0_4 = arith.constant 0 : index
    %c0_5 = arith.constant 0 : index
    %4 = vector.load %arg5[%c0_4, %c0_5] : memref<48x16xf32, #tpu.memory_space<vmem>>, vector<24x16xf32>
    tpu.vector_store %arg5[%c0_4, %c0_5], %3 {strides = array<i32>} : memref<48x16xf32, #tpu.memory_space<vmem>>, vector<24x16xf32>,
    %c1 = arith.constant 1 : index
    %c0_6 = arith.constant 0 : index
    %c0_7 = arith.constant 0 : index
    %5 = vector.load %arg3[%c1, %c0_6, %c0_7] : memref<2x16x16xf32, #tpu.memory_space<vmem>>, vector<1x16x16xf32>
    %6 = vector.shape_cast %5 : vector<1x16x16xf32> to vector<16x16xf32>
    %cst_8 = arith.constant dense<0.000000e+00> : vector<24x16xf32>
    %7 = tpu.matmul %0, %6, %cst_8 {dimension_numbers = #tpu.dot_dimension_numbers<[1], [0], [0], [1], [0, 0, 1, 1], [], []>} : vector<24x16xf32>, vector<16x16xf32>, vector<24x16xf32> -> vector<24x16xf32>
    %c24 = arith.constant 24 : index
    %c0_9 = arith.constant 0 : index
    %8 = vector.load %arg5[%c24, %c0_9] : memref<48x16xf32, #tpu.memory_space<vmem>>, vector<24x16xf32>
    tpu.vector_store %arg5[%c24, %c0_9], %7 {strides = array<i32>} : memref<48x16xf32, #tpu.memory_space<vmem>>, vector<24x16xf32>,
    %c0_10 = arith.constant 0 : index
    %c0_11 = arith.constant 0 : index
    %9 = vector.load %arg5[%c0_10, %c0_11] : memref<48x16xf32, #tpu.memory_space<vmem>>, vector<48x16xf32>
    %c0_12 = arith.constant 0 : index
    %c0_13 = arith.constant 0 : index
    %10 = vector.load %arg2[%c0_12, %c0_13] : memref<16x128xf32, #tpu.memory_space<vmem>>, vector<16x128xf32>
    %cst_14 = arith.constant dense<0.000000e+00> : vector<48x128xf32>
    %11 = tpu.matmul %9, %10, %cst_14 {dimension_numbers = #tpu.dot_dimension_numbers<[1], [0], [0], [1], [0, 0, 1, 1], [], []>} : vector<48x16xf32>, vector<16x128xf32>, vector<48x128xf32> -> vector<48x128xf32>
    %c0_15 = arith.constant 0 : index
    %c0_16 = arith.constant 0 : index
    %12 = vector.load %arg4[%c0_15, %c0_16] : memref<48x128xf32, #tpu.memory_space<vmem>>, vector<48x128xf32>
    tpu.vector_store %arg4[%c0_15, %c0_16], %11 {strides = array<i32>} : memref<48x128xf32, #tpu.memory_space<vmem>>, vector<48x128xf32>,
    return
  }
  func.func @transform_0(%arg0: i32) -> (i32, i32) {
    %c0_i32 = arith.constant 0 : i32
    %c0_i32_0 = arith.constant 0 : i32
    %c0_i32_1 = arith.constant 0 : i32
    return %c0_i32, %c0_i32_0 : i32, i32
  }
  func.func @transform_1(%arg0: i32) -> (i32, i32) {
    %c0_i32 = arith.constant 0 : i32
    %c0_i32_0 = arith.constant 0 : i32
    %c0_i32_1 = arith.constant 0 : i32
    return %c0_i32, %c0_i32_0 : i32, i32
  }
  func.func @transform_2(%arg0: i32) -> (i32, i32, i32) {
    %c0_i32 = arith.constant 0 : i32
    %c0_i32_0 = arith.constant 0 : i32
    %c0_i32_1 = arith.constant 0 : i32
    return %arg0, %c0_i32, %c0_i32_0 : i32, i32, i32
  }
  func.func @transform_3(%arg0: i32) -> (i32, i32) {
    %c0_i32 = arith.constant 0 : i32
    %c0_i32_0 = arith.constant 0 : i32
    return %arg0, %c0_i32 : i32, i32
  }
}

</mosaic_0001>

<llo_original>
// kernel: run.1
$region0: #{run.1}
  #allocation0 [shape = 'u32[]', space=smem, size = 0x4, offset = 0x4, fixed_abs, tag = 'smem constant byte address 0x4 - core index']
  #allocation1 [shape = 'u32[72,128]{1,0:T(1,128)}', space=vmem, size = 0x9000, scoped, tag = 'internal scratch']
  #allocation2 [shape = 'f32[48,16]{1,0:T(8,128)}', space=vmem, size = 0x6000, scoped, tag = 'scratch operand']
  %s0 = inlined_call_operand.vmem [shape: f32[24,16], index: 0, kind: input, shape index: {}]
  %s1 = inlined_call_operand.vmem [shape: f32[16,128], index: 1, kind: input, shape index: {}]
  %s2 = inlined_call_operand.vmem [shape: f32[8,16,16], index: 2, kind: input, shape index: {}]
  %s3 = inlined_call_operand.vmem [shape: f32[192,128], index: 3, kind: output, shape index: {}]
  %s4 = sld [smem:[#allocation0]]
  $region45: #{run.1} parent=0
    _
  %s6 = ssub.s32 1, %s4
  %s7 = scalar_select 0, %s6, %s4
  loop: start=0, step=1, limit=6
  $region2: #{run.1} parent=0 // loop_pre_header
    _
  $region3: #{run.1} parent=0 // loop_header
    %s9 = sphi 0, %s13
    %p10 = scmp.ge.s32.totalorder %s9, 6
    %s17 = sphi 0, %s17
    %s19 = sphi 0, %s17
    %s20 = sphi 0, %s19
    %s34 = sphi 0, %s20
    %s38 = sphi 0, %s38
    %s40 = sphi 0, %s38
    %s41 = sphi 0, %s40
    %s55 = sphi 0, %s41
    %s61 = sphi 0, %s63
    %s64 = sphi 0, %s61
    %s65 = sphi 0, %s64
    %s81 = sphi 0, %s65
    %s87 = sphi 0, %s89
    %s90 = sphi 0, %s87
    %s91 = sphi 0, %s90
    %s107 = sphi 0, %s91
  $region4: #{run.1} parent=0 // loop_header_branch
    %12 = sbr.rel (%p10) target = $region8
  $region5: #{run.1} parent=0 // loop_body
    %s14 = ssub.s32 %s9, 1
    %s15 = ssub.s32 %s9, 2
    %s16 = sadd.s32 %s9, 1
    %s18 = sadd.s32 %s17, 1
    %p21 = scmp.eq.s32.totalorder %s9, 3
    %p22 = scmp.ne.s32.totalorder %s17, %s19
    %p23 = scmp.eq.s32.totalorder %s9, 0
    %p24 = por %p22, %p23
    %p25 = scmp.ne.s32.totalorder %s17, %s19
    %p26 = scmp.eq.s32.totalorder %s14, 3
    %p27 = por %p25, %p26
    %p28 = scmp.ne.s32.totalorder %s19, %s20
    %p29 = scmp.eq.s32.totalorder %s14, 0
    %p30 = por %p28, %p29
    %p31 = scmp.ne.s32.totalorder %s19, %s20
    %p32 = scmp.eq.s32.totalorder %s15, 3
    %p33 = por %p31, %p32
    %p35 = scmp.ne.s32.totalorder %s20, %s34
    %p36 = scmp.eq.s32.totalorder %s15, 0
    %p37 = por %p35, %p36
    %s39 = sadd.s32 %s38, 1
    %p42 = scmp.eq.s32.totalorder %s9, 3
    %p43 = scmp.ne.s32.totalorder %s38, %s40
    %p44 = scmp.eq.s32.totalorder %s9, 0
    %p45 = por %p43, %p44
    %p46 = scmp.ne.s32.totalorder %s38, %s40
    %p47 = scmp.eq.s32.totalorder %s14, 3
    %p48 = por %p46, %p47
    %p49 = scmp.ne.s32.totalorder %s40, %s41
    %p50 = scmp.eq.s32.totalorder %s14, 0
    %p51 = por %p49, %p50
    %p52 = scmp.ne.s32.totalorder %s40, %s41
    %p53 = scmp.eq.s32.totalorder %s15, 3
    %p54 = por %p52, %p53
    %p56 = scmp.ne.s32.totalorder %s41, %s55
    %p57 = scmp.eq.s32.totalorder %s15, 0
    %p58 = por %p56, %p57
    %s59 = ssub.s32 %s9, %s16
    %p60 = scmp.eq.s32.totalorder %s59, 0
    %s62 = sadd.s32 %s61, 1
    %s63 = scalar_select %p60, %s61, %s62
    %p66 = pneg %p60
    %p67 = scmp.eq.s32.totalorder %s9, 3
    %p68 = por %p66, %p67
    %p69 = scmp.ne.s32.totalorder %s61, %s64
    %p70 = scmp.eq.s32.totalorder %s9, 0
    %p71 = por %p69, %p70
    %p72 = scmp.ne.s32.totalorder %s61, %s64
    %p73 = scmp.eq.s32.totalorder %s14, 3
    %p74 = por %p72, %p73
    %p75 = scmp.ne.s32.totalorder %s64, %s65
    %p76 = scmp.eq.s32.totalorder %s14, 0
    %p77 = por %p75, %p76
    %p78 = scmp.ne.s32.totalorder %s64, %s65
    %p79 = scmp.eq.s32.totalorder %s15, 3
    %p80 = por %p78, %p79
    %p82 = scmp.ne.s32.totalorder %s65, %s81
    %p83 = scmp.eq.s32.totalorder %s15, 0
    %p84 = por %p82, %p83
    %s85 = ssub.s32 %s9, %s16
    %p86 = scmp.eq.s32.totalorder %s85, 0
    %s88 = sadd.s32 %s87, 1
    %s89 = scalar_select %p86, %s87, %s88
    %p92 = pneg %p86
    %p93 = scmp.eq.s32.totalorder %s9, 3
    %p94 = por %p92, %p93
    %p95 = scmp.ne.s32.totalorder %s87, %s90
    %p96 = scmp.eq.s32.totalorder %s9, 0
    %p97 = por %p95, %p96
    %p98 = scmp.ne.s32.totalorder %s87, %s90
    %p99 = scmp.eq.s32.totalorder %s14, 3
    %p100 = por %p98, %p99
    %p101 = scmp.ne.s32.totalorder %s90, %s91
    %p102 = scmp.eq.s32.totalorder %s14, 0
    %p103 = por %p101, %p102
    %p104 = scmp.ne.s32.totalorder %s90, %s91
    %p105 = scmp.eq.s32.totalorder %s15, 3
    %p106 = por %p104, %p105
    %p108 = scmp.ne.s32.totalorder %s91, %s107
    %p109 = scmp.eq.s32.totalorder %s15, 0
    %p110 = por %p108, %p109
    %p111 = scmp.le.s32.totalorder 1, %s9
    %p112 = scmp.lt.s32.totalorder %s9, 5
    %p113 = pnand %p111, %p112
    %p114 = pneg %p113
    // Predicated region
    $region9: #{run.1} parent=5 // pred_check
      _
    $region10: #{run.1} parent=5 // pred_check_branch
      %116 = sbr.rel (%p113) target = $region12
    $region11: #{run.1} parent=5 // pred_region
      %s117 = ssub.s32 %s9, 1
      // Predicated region
      $region13: #{run.1} parent=11 // pred_check
        %p118 = pneg %p30
      $region14: #{run.1} parent=11 // pred_check_branch
        %120 = sbr.rel (%p118) target = $region16
      $region15: #{run.1} parent=11 // pred_region
        _
      $region16: #{run.1} parent=11 // pred_fallthru
        _
      // Predicated region
      $region17: #{run.1} parent=11 // pred_check
        %p121 = pneg %p51
      $region18: #{run.1} parent=11 // pred_check_branch
        %123 = sbr.rel (%p121) target = $region20
      $region19: #{run.1} parent=11 // pred_region
        _
      $region20: #{run.1} parent=11 // pred_fallthru
        _
    $region12: #{run.1} parent=5 // pred_fallthru
      _
    %p124 = scmp.lt.s32.totalorder %s9, 4
    // Predicated region
    $region21: #{run.1} parent=5 // pred_check
      %p125 = pneg %p124
    $region22: #{run.1} parent=5 // pred_check_branch
      %127 = sbr.rel (%p125) target = $region24
    $region23: #{run.1} parent=5 // pred_region
      // Predicated region
      $region25: #{run.1} parent=23 // pred_check
        %p128 = pneg %p71
      $region26: #{run.1} parent=23 // pred_check_branch
        %130 = sbr.rel (%p128) target = $region28
      $region27: #{run.1} parent=23 // pred_region
        %s131 = smul.u32 2, %s9
        %p132 = scmp.lt.s32.totalorder %s131, 7
        %s133 = scalar_select %p132, %s131, 7
        %s134 = smul.addr %s133, 2
        %s135 = smul.addr %s134, 8
        %s136 = scalar_lea.vmem %s2, %s135
        %s137 = smul.u32 2, %s9
      $region28: #{run.1} parent=23 // pred_fallthru
        _
    $region24: #{run.1} parent=5 // pred_fallthru
      _
    %p138 = scmp.le.s32.totalorder 1, %s9
    %p139 = scmp.lt.s32.totalorder %s9, 5
    %p140 = pnand %p138, %p139
    %p141 = pneg %p140
    // Predicated region
    $region29: #{run.1} parent=5 // pred_check
      _
    $region30: #{run.1} parent=5 // pred_check_branch
      %143 = sbr.rel (%p140) target = $region32
    $region31: #{run.1} parent=5 // pred_region
      %s144 = ssub.s32 %s9, 1
      %p145 = pneg %p30
      %p146 = pneg %p27
      %p147 = pneg %p51
      %p148 = pneg %p48
      %s149 = smul.u32 2, %s14
      %p150 = scmp.lt.s32.totalorder %s149, 7
      %s151 = scalar_select %p150, %s149, 7
      %s152 = smul.addr %s151, 2
      %s153 = smul.addr %s152, 8
      %s154 = scalar_lea.vmem %s2, %s153
      %p155 = pneg %p77
      %p156 = pneg %p74
      %p157 = pneg %p103
      %p158 = pneg %p100
      %s159 = smul.u32 6, %s14
      %p160 = scmp.lt.s32.totalorder %s159, 23
      %s161 = scalar_select %p160, %s159, 23
      %s162 = smul.addr %s161, 8
      %s163 = scalar_lea.vmem %s3, %s162
      %s164 = smul.u32 2, %s14
      %p165 = scmp.lt.s32.totalorder %s164, 7
      %s166 = scalar_select %p165, %s164, 7
      %s167 = smul.addr %s166, 2
      %s168 = smul.addr %s167, 8
      %s169 = scalar_lea.vmem %s2, %s168
      %s170 = smul.u32 2, %s14
      %s171 = smul.u32 6, %s14
      %p172 = scmp.lt.s32.totalorder %s171, 23
      %s173 = scalar_select %p172, %s171, 23
      %s174 = smul.addr %s173, 8
      %s175 = scalar_lea.vmem %s3, %s174
      %s176 = smul.u32 6, %s14
      %v177 = vld [vmem:[%s0] sm:$0xff]
      %v178 = vld [vmem:[%s0 + $0x8] sm:$0xff]
      %v179 = vld [vmem:[%s0 + $0x10] sm:$0xff]
      %v180 = vld [vmem:[%s169] sm:$0xff]
      %v181 = vld [vmem:[%s169 + $0x8] sm:$0xff]
      %vm182 = vcmask 130048
      %v184 = vsel %vm182, %v177, 0
      %v187 = vsel %vm182, %v178, 0
      %v190 = vsel %vm182, %v179, 0
      %192 = vmatpush.msra.mxu0 0.0
      %193 = vmatpush.msra.mxu0 0.0
      %194 = vmatpush.msra.mxu0 0.0
      %195 = vmatpush.msra.mxu0 0.0
      %196 = vmatpush.msra.mxu0 0.0
      %197 = vmatpush.msra.mxu0 0.0
      %198 = vmatpush.msra.mxu0 0.0
      %199 = vmatpush.msra.mxu0 0.0
      %200 = vmatpush.msra.mxu0 0.0
      %201 = vmatpush.msra.mxu0 0.0
      %202 = vmatpush.msra.mxu0 0.0
      %203 = vmatpush.msra.mxu0 0.0
      %204 = vmatpush.msra.mxu0 0.0
      %205 = vmatpush.msra.mxu0 0.0
      %206 = vmatpush.msra.mxu0 %v181
      %207 = vmatpush.msra.mxu0 %v180
      %208 = vmatmul.f32.gmra.mxu0 %v184
      %v209 = vpop.f32.mrf.mxu0
      %v210 = vadd.f32 0.0, %v209
      %211 = vmatmul.f32.gmra.mxu0 %v187
      %v212 = vpop.f32.mrf.mxu0
      %v213 = vadd.f32 0.0, %v212
      %214 = vmatmul.f32.gmra.mxu0 %v190
      %v215 = vpop.f32.mrf.mxu0
      %v216 = vadd.f32 0.0, %v215
      %217 = vdwg.mxu0
      %218 = vst.msk [vmem:[#allocation2] sm:$0xff] %vm182, %v210
      %219 = vst.msk [vmem:[#allocation2 + $0x8] sm:$0xff] %vm182, %v213
      %220 = vst.msk [vmem:[#allocation2 + $0x10] sm:$0xff] %vm182, %v216
      %s221 = scalar_lea.vmem %s169, 16
      %v222 = vld [vmem:[%s221] sm:$0xff]
      %v223 = vld [vmem:[%s221 + $0x8] sm:$0xff]
      %224 = vmatpush.msra.mxu0 0.0
      %225 = vmatpush.msra.mxu0 0.0
      %226 = vmatpush.msra.mxu0 0.0
      %227 = vmatpush.msra.mxu0 0.0
      %228 = vmatpush.msra.mxu0 0.0
      %229 = vmatpush.msra.mxu0 0.0
      %230 = vmatpush.msra.mxu0 0.0
      %231 = vmatpush.msra.mxu0 0.0
      %232 = vmatpush.msra.mxu0 0.0
      %233 = vmatpush.msra.mxu0 0.0
      %234 = vmatpush.msra.mxu0 0.0
      %235 = vmatpush.msra.mxu0 0.0
      %236 = vmatpush.msra.mxu0 0.0
      %237 = vmatpush.msra.mxu0 0.0
      %238 = vmatpush.msra.mxu0 %v223
      %239 = vmatpush.msra.mxu0 %v222
      %240 = vmatmul.f32.gmra.mxu0 %v184
      %v241 = vpop.f32.mrf.mxu0
      %v242 = vadd.f32 0.0, %v241
      %243 = vmatmul.f32.gmra.mxu0 %v187
      %v244 = vpop.f32.mrf.mxu0
      %v245 = vadd.f32 0.0, %v244
      %246 = vmatmul.f32.gmra.mxu0 %v190
      %v247 = vpop.f32.mrf.mxu0
      %v248 = vadd.f32 0.0, %v247
      %249 = vdwg.mxu0
      %250 = vst.msk [vmem:[#allocation2 + $0x18] sm:$0xff] %vm182, %v242
      %251 = vst.msk [vmem:[#allocation2 + $0x20] sm:$0xff] %vm182, %v245
      %252 = vst.msk [vmem:[#allocation2 + $0x28] sm:$0xff] %vm182, %v248
      %v253 = vld [vmem:[#allocation2] sm:$0xff]
      %v254 = vld [vmem:[#allocation2 + $0x8] sm:$0xff]
      %v255 = vld [vmem:[#allocation2 + $0x10] sm:$0xff]
      %v256 = vld [vmem:[#allocation2 + $0x18] sm:$0xff]
      %v257 = vld [vmem:[#allocation2 + $0x20] sm:$0xff]
      %v258 = vld [vmem:[#allocation2 + $0x28] sm:$0xff]
      %v259 = vld [vmem:[%s1] sm:$0xff]
      %v260 = vld [vmem:[%s1 + $0x8] sm:$0xff]
      %v262 = vsel %vm182, %v253, 0
      %v265 = vsel %vm182, %v254, 0
      %v268 = vsel %vm182, %v255, 0
      %v271 = vsel %vm182, %v256, 0
      %v274 = vsel %vm182, %v257, 0
      %v277 = vsel %vm182, %v258, 0
      %279 = vmatpush.msra.mxu0 0.0
      %280 = vmatpush.msra.mxu0 0.0
      %281 = vmatpush.msra.mxu0 0.0
      %282 = vmatpush.msra.mxu0 0.0
      %283 = vmatpush.msra.mxu0 0.0
      %284 = vmatpush.msra.mxu0 0.0
      %285 = vmatpush.msra.mxu0 0.0
      %286 = vmatpush.msra.mxu0 0.0
      %287 = vmatpush.msra.mxu0 0.0
      %288 = vmatpush.msra.mxu0 0.0
      %289 = vmatpush.msra.mxu0 0.0
      %290 = vmatpush.msra.mxu0 0.0
      %291 = vmatpush.msra.mxu0 0.0
      %292 = vmatpush.msra.mxu0 0.0
      %293 = vmatpush.msra.mxu0 %v260
      %294 = vmatpush.msra.mxu0 %v259
      %295 = vmatmul.f32.gmra.mxu0 %v262
      %v296 = vpop.f32.mrf.mxu0
      %v297 = vadd.f32 0.0, %v296
      %298 = vmatmul.f32.gmra.mxu0 %v265
      %v299 = vpop.f32.mrf.mxu0
      %v300 = vadd.f32 0.0, %v299
      %301 = vmatmul.f32.gmra.mxu0 %v268
      %v302 = vpop.f32.mrf.mxu0
      %v303 = vadd.f32 0.0, %v302
      %304 = vmatmul.f32.gmra.mxu0 %v271
      %v305 = vpop.f32.mrf.mxu0
      %v306 = vadd.f32 0.0, %v305
      %307 = vmatmul.f32.gmra.mxu0 %v274
      %v308 = vpop.f32.mrf.mxu0
      %v309 = vadd.f32 0.0, %v308
      %310 = vmatmul.f32.gmra.mxu0 %v277
      %v311 = vpop.f32.mrf.mxu0
      %v312 = vadd.f32 0.0, %v311
      %313 = vdwg.mxu0
      %314 = vst [vmem:[%s175] sm:$0xff] %v297
      %315 = vst [vmem:[%s175 + $0x8] sm:$0xff] %v300
      %316 = vst [vmem:[%s175 + $0x10] sm:$0xff] %v303
      %317 = vst [vmem:[%s175 + $0x18] sm:$0xff] %v306
      %318 = vst [vmem:[%s175 + $0x20] sm:$0xff] %v309
      %319 = vst [vmem:[%s175 + $0x28] sm:$0xff] %v312
      %s320 = smul.u32 6, %s14
      %p321 = scmp.lt.s32.totalorder %s320, 23
      %s322 = scalar_select %p321, %s320, 23
      %s323 = smul.addr %s322, 8
      %s324 = scalar_lea.vmem %s3, %s323
      // Predicated region
      $region33: #{run.1} parent=31 // pred_check
        %p325 = pneg %p100
      $region34: #{run.1} parent=31 // pred_check_branch
        %327 = sbr.rel (%p325) target = $region36
      $region35: #{run.1} parent=31 // pred_region
        %s328 = smul.u32 6, %s14
      $region36: #{run.1} parent=31 // pred_fallthru
        _
    $region32: #{run.1} parent=5 // pred_fallthru
      _
    %p329 = scmp.le.s32.totalorder 2, %s9
    // Predicated region
    $region37: #{run.1} parent=5 // pred_check
      %p330 = pneg %p329
    $region38: #{run.1} parent=5 // pred_check_branch
      %332 = sbr.rel (%p330) target = $region40
    $region39: #{run.1} parent=5 // pred_region
      %s333 = ssub.s32 %s9, 2
      // Predicated region
      $region41: #{run.1} parent=39 // pred_check
        %p334 = pneg %p106
      $region42: #{run.1} parent=39 // pred_check_branch
        %336 = sbr.rel (%p334) target = $region44
      $region43: #{run.1} parent=39 // pred_region
        %s337 = smul.u32 6, %s15
        %p338 = scmp.lt.s32.totalorder %s337, 23
        %s339 = scalar_select %p338, %s337, 23
        %s340 = smul.addr %s339, 8
        %s341 = scalar_lea.vmem %s3, %s340
      $region44: #{run.1} parent=39 // pred_fallthru
        _
    $region40: #{run.1} parent=5 // pred_fallthru
      _
  $region6: #{run.1} parent=0 // loop_footer
    %s13 = sadd.s32 1, %s9
  $region7: #{run.1} parent=0 // loop_footer_branch
    %8 = sbr.rel target = $region3
  $region8: #{run.1} parent=0 // loop_exit
    _

</llo_original>
